<compile_context>
chip_gen: v7x
topology: tpu7x:2x2x1
jax: 0.10.0
libtpu: 0.0.40
codegen_flags: <defaults>
</compile_context>

<pallas_src>
import functools

import jax
import jax.numpy as jnp
from jax.experimental import pallas as pl
from jax.experimental.pallas import tpu as pltpu

_LANES = 128
_C = 0.7978845608028654          # sqrt(2/pi)
_CA = _C * 0.044715              # folded constant: c * 0.044715


def _round_up(v, m):
    return (v + m - 1) // m * m


def _gelu_kernel(x_ref, o_ref):
    # Always compute in f32 (PyTorch opmath for half/bf16; free at HBM roofline).
    x = x_ref[...].astype(jnp.float32)
    x2 = x * x
    inner = x * (_C + _CA * x2)          # = c * (x + 0.044715 * x^3)
    t = jnp.tanh(inner)                  # single EUP vtanh push per vreg
    hx = 0.5 * x
    o_ref[...] = (hx + hx * t).astype(o_ref.dtype)


def _gelu_jnp(x):
    """Pure-jnp reference / tail path (f32 opmath, same folded polynomial)."""
    xf = x.astype(jnp.float32)
    inner = xf * (_C + _CA * xf * xf)
    return (0.5 * xf * (1.0 + jnp.tanh(inner))).astype(x.dtype)


@functools.partial(jax.jit, static_argnames=("target_tile_bytes",))
def gelu(x, *, target_tile_bytes=2 << 20):
    """Tanh-approximation GELU, matching the PyTorch module's forward."""
    orig_shape = x.shape
    orig_dtype = x.dtype
    n = x.size
    itemsize = jnp.dtype(orig_dtype).itemsize
    sublane = {1: 32, 2: 16}.get(itemsize, 8)

    x_flat = x.reshape(-1)
    bulk = (n // _LANES) * _LANES        # lane-aligned prefix handled by the kernel
    tail = n - bulk                      # <128-element remainder handled by jnp

    parts = []
    if bulk:
        rows = bulk // _LANES
        x2d = (x_flat[:bulk] if tail else x_flat).reshape(rows, _LANES)

        # ~target_tile_bytes per buffer keeps us on the measured 85%+ HBM-roofline
        # plateau; 2 bufs x (in+out) stays well inside the scoped-VMEM default on
        # every generation (v5e 16 MiB, v6e/v7x 32 MiB of 128/64 MiB physical).
        tile_rows_target = max(
            sublane, (target_tile_bytes // (_LANES * itemsize)) // sublane * sublane
        )
        tile_rows = min(tile_rows_target, _round_up(rows, sublane))
        # Keep >= ~8 pipeline steps for mid/large tensors (DMA/compute overlap;
        # more steps to shard across the 2 TCs on v7x), as long as each step
        # still moves >= ~256 KiB per buffer.
        cap = _round_up(pl.cdiv(rows, 8), sublane)
        if cap * _LANES * itemsize >= (256 << 10):
            tile_rows = min(tile_rows, cap)
        if tile_rows >= rows:
            # Single block equal to the full (possibly ragged) array dims — legal
            # even when rows is not a multiple of the sublane count.
            tile_rows = rows
        grid = (pl.cdiv(rows, tile_rows),)   # partial edge block handled by Pallas

        cost = pl.CostEstimate(
            flops=7 * bulk,
            transcendentals=bulk,
            bytes_accessed=2 * bulk * itemsize,
        )

        out2d = pl.pallas_call(
            _gelu_kernel,
            out_shape=jax.ShapeDtypeStruct((rows, _LANES), orig_dtype),
            grid_spec=pltpu.PrefetchScalarGridSpec(
                num_scalar_prefetch=0,
                grid=grid,
                in_specs=[pl.BlockSpec((tile_rows, _LANES), lambda i: (i, 0))],
                out_specs=pl.BlockSpec((tile_rows, _LANES), lambda i: (i, 0)),
            ),
            compiler_params=pltpu.CompilerParams(
                # Independent steps: sharded across TensorCores on multi-TC chips.
                dimension_semantics=("parallel",),
            ),
            cost_estimate=cost,
        )(x2d)
        parts.append(out2d.reshape(-1))

    if tail:
        parts.append(_gelu_jnp(x_flat[bulk:]))

    out_flat = parts[0] if len(parts) == 1 else jnp.concatenate(parts)
    return out_flat.reshape(orig_shape)


if __name__ == "__main__":
    key = jax.random.PRNGKey(0)

    # Main check: shape from the module's example usage (zero-copy fast path,
    # 2048 elements = 16 lane-dense rows).
    x = jax.random.normal(key, (2, 4, 16, 16), dtype=jnp.float32)
    out = gelu(x)
    jax.block_until_ready(out)
    ref = _gelu_jnp(x)
    assert out.shape == x.shape and out.dtype == x.dtype
    assert jnp.allclose(out, ref, atol=1e-5, rtol=1e-5)

    # Lane-misaligned size (<128 elements of tail only): pure jnp tail path.
    x2 = jax.random.normal(jax.random.PRNGKey(1), (3, 5, 7), dtype=jnp.float32)
    out2 = gelu(x2)
    jax.block_until_ready(out2)
    assert jnp.allclose(out2, _gelu_jnp(x2), atol=1e-5, rtol=1e-5)

    # Ragged row count (35 rows, not a multiple of 8) + 70-element tail:
    # exercises the full-dim single block and the bulk+tail concatenation.
    x3 = jax.random.normal(jax.random.PRNGKey(2), (5, 7, 130), dtype=jnp.float32)
    out3 = gelu(x3)
    jax.block_until_ready(out3)
    assert jnp.allclose(out3, _gelu_jnp(x3), atol=1e-5, rtol=1e-5)

    # bf16 storage, f32 compute (matches PyTorch opmath for bf16 inputs).
    xb = jax.random.normal(jax.random.PRNGKey(3), (2, 4, 16, 16), dtype=jnp.bfloat16)
    outb = gelu(xb)
    jax.block_until_ready(outb)
    assert outb.dtype == jnp.bfloat16
    assert jnp.allclose(
        outb.astype(jnp.float32), _gelu_jnp(xb).astype(jnp.float32),
        atol=2e-2, rtol=2e-2,
    )

    print("KERNEL_OK")
</pallas_src>

<mosaic_0001>
module attributes {stable_mosaic.version = 11 : i64} {
  func.func @_gelu_kernel(%arg0: i32, %arg1: memref<16x128xf32, #tpu.memory_space<vmem>>, %arg2: memref<16x128xf32, #tpu.memory_space<vmem>>) attributes {dimension_semantics = [#tpu.dimension_semantics<parallel>], iteration_bounds = array<i64: 1>, scalar_prefetch = 0 : i64, scratch_operands = 0 : i64, tpu.core_type = #tpu.core_type<tc>, window_params = [{transform_indices = @transform_0, window_bounds = array<i64: 16, 128>}, {transform_indices = @transform_1, window_bounds = array<i64: 16, 128>}]} {
    %c0 = arith.constant 0 : index
    %c0_0 = arith.constant 0 : index
    %0 = vector.load %arg1[%c0, %c0_0] : memref<16x128xf32, #tpu.memory_space<vmem>>, vector<16x128xf32>
    %1 = arith.mulf %0, %0 : vector<16x128xf32>
    %cst = arith.constant 0.0356774069 : f32
    %2 = vector.broadcast %cst : f32 to vector<16x128xf32>
    %3 = arith.mulf %2, %1 : vector<16x128xf32>
    %cst_1 = arith.constant 0.797884583 : f32
    %4 = vector.broadcast %cst_1 : f32 to vector<16x128xf32>
    %5 = arith.addf %4, %3 : vector<16x128xf32>
    %6 = arith.mulf %0, %5 : vector<16x128xf32>
    %7 = math.tanh %6 : vector<16x128xf32>
    %cst_2 = arith.constant 5.000000e-01 : f32
    %8 = vector.broadcast %cst_2 : f32 to vector<16x128xf32>
    %9 = arith.mulf %8, %0 : vector<16x128xf32>
    %10 = arith.mulf %9, %7 : vector<16x128xf32>
    %11 = arith.addf %9, %10 : vector<16x128xf32>
    %c0_3 = arith.constant 0 : index
    %c0_4 = arith.constant 0 : index
    %12 = vector.load %arg2[%c0_3, %c0_4] : memref<16x128xf32, #tpu.memory_space<vmem>>, vector<16x128xf32>
    tpu.vector_store %arg2[%c0_3, %c0_4], %11 {strides = array<i32>} : memref<16x128xf32, #tpu.memory_space<vmem>>, vector<16x128xf32>,
    return
  }
  func.func @transform_0(%arg0: i32) -> (i32, i32) {
    %c0_i32 = arith.constant 0 : i32
    %c0_i32_0 = arith.constant 0 : i32
    return %arg0, %c0_i32 : i32, i32
  }
  func.func @transform_1(%arg0: i32) -> (i32, i32) {
    %c0_i32 = arith.constant 0 : i32
    %c0_i32_0 = arith.constant 0 : i32
    return %arg0, %c0_i32 : i32, i32
  }
}

</mosaic_0001>

<llo_original>
// kernel: gelu.1
$region0: #{gelu.1}
  #allocation0 [shape = 'u32[]', space=smem, size = 0x4, offset = 0x4, fixed_abs, tag = 'smem constant byte address 0x4 - core index']
  #allocation1 [shape = 'u32[144,128]{1,0:T(1,128)}', space=vmem, size = 0x12000, scoped, tag = 'internal scratch']
  %s0 = inlined_call_operand.vmem [shape: f32[16,128], index: 0, kind: input, shape index: {}]
  %s1 = inlined_call_operand.vmem [shape: f32[16,128], index: 1, kind: output, shape index: {}]
  %s2 = sld [smem:[#allocation0]]
  $region14: #{gelu.1} parent=0
    _
  %s4 = ssub.s32 1, %s2
  %s5 = scalar_select 0, %s4, %s2
  // Predicated region
  $region2: #{gelu.1} parent=0 // pred_check
    _
  $region3: #{gelu.1} parent=0 // pred_check_branch
    %7 = sbr.rel (0) target = $region5
  $region4: #{gelu.1} parent=0 // pred_region
    _
  $region5: #{gelu.1} parent=0 // pred_fallthru
    _
  %v8 = vld [vmem:[%s0] sm:$0xff]
  %v9 = vld [vmem:[%s0 + $0x8] sm:$0xff]
  %v10 = vmul.f32 %v8, %v8
  %v11 = vmul.f32 %v9, %v9
  %v12 = vmul.f32 %v10, 0.035677407
  %v13 = vmul.f32 %v11, 0.035677407
  %v14 = vadd.f32 %v12, 0.7978846
  %v15 = vadd.f32 %v13, 0.7978846
  %v16 = vmul.f32 %v8, %v14
  %v17 = vmul.f32 %v9, %v15
  %v18 = vtanh.pop %v16
  %v19 = vtanh.pop %v17
  %v20 = vmul.f32 %v8, 0.5
  %v21 = vmul.f32 %v9, 0.5
  %v22 = vmul.f32 %v20, %v18
  %v23 = vmul.f32 %v21, %v19
  %v24 = vadd.f32 %v20, %v22
  %v25 = vadd.f32 %v21, %v23
  %26 = vst [vmem:[%s1] sm:$0xff] %v24
  %27 = vst [vmem:[%s1 + $0x8] sm:$0xff] %v25
  // Predicated region
  $region6: #{gelu.1} parent=0 // pred_check
    _
  $region7: #{gelu.1} parent=0 // pred_check_branch
    %29 = sbr.rel (0) target = $region9
  $region8: #{gelu.1} parent=0 // pred_region
    _
  $region9: #{gelu.1} parent=0 // pred_fallthru
    _
  // Predicated region
  $region10: #{gelu.1} parent=0 // pred_check
    _
  $region11: #{gelu.1} parent=0 // pred_check_branch
    %31 = sbr.rel (0) target = $region13
  $region12: #{gelu.1} parent=0 // pred_region
    _
  $region13: #{gelu.1} parent=0 // pred_fallthru
    _

</llo_original>
